<compile_context>
chip_gen: v7x
topology: tpu7x:2x2x1
jax: 0.10.0
libtpu: 0.0.40
codegen_flags: <defaults>
</compile_context>

<pallas_src>
import jax
import jax.numpy as jnp
from jax.experimental import pallas as pl
from jax.experimental.pallas import tpu as pltpu

_LANES = 128  # lane-pad the 1-wide output head inside the kernel only


def _round_up(n, m):
    return ((n + m - 1) // m) * m


def _qvalue_kernel(x_ref, a_ref, w1x_ref, w1a_ref, b1_ref,
                   w2_ref, b2_ref, w3p_ref, b3_ref, out_ref):
    # fc1 + ReLU  (concat folded into two dots: cat@w1 == x@w1x + a@w1a)
    h1 = jnp.dot(x_ref[...], w1x_ref[...], preferred_element_type=jnp.float32)
    h1 = h1 + jnp.dot(a_ref[...], w1a_ref[...],
                      preferred_element_type=jnp.float32)
    h1 = jnp.maximum(h1 + b1_ref[...], 0.0)
    # fc2 + ReLU (bf16 MXU, f32 accumulate / elementwise)
    h2 = jnp.dot(h1.astype(jnp.bfloat16), w2_ref[...],
                 preferred_element_type=jnp.float32)
    h2 = jnp.maximum(h2 + b2_ref[...], 0.0)
    # fc_out: lane-padded (tb, 128) product stays in VMEM; only column 0 is
    # meaningful, and only that column goes to HBM.
    q = jnp.dot(h2.astype(jnp.bfloat16), w3p_ref[...],
                preferred_element_type=jnp.float32)
    out_ref[...] = (q[:, :1] + b3_ref[...]).astype(out_ref.dtype)


def prepare_params(params, state_dim):
    """One-time weight prep: split w1, pad hidden dim to 128, lane-pad the
    output head, cast matmul operands to bf16. Padding is exact (zeros)."""
    w1, b1, w2, b2, w3, b3 = (params["w1"], params["b1"], params["w2"],
                              params["b2"], params["w3"], params["b3"])
    hidden_dim = w2.shape[0]
    hp = _round_up(hidden_dim, _LANES)
    dh = hp - hidden_dim

    w1x = jnp.pad(w1[:state_dim, :], ((0, 0), (0, dh))).astype(jnp.bfloat16)
    w1a = jnp.pad(w1[state_dim:, :], ((0, 0), (0, dh))).astype(jnp.bfloat16)
    b1p = jnp.pad(b1, ((0, 0), (0, dh)))                       # f32
    w2p = jnp.pad(w2, ((0, dh), (0, dh))).astype(jnp.bfloat16)
    b2p = jnp.pad(b2, ((0, 0), (0, dh)))                       # f32
    w3p = jnp.pad(w3, ((0, dh), (0, _LANES - w3.shape[1]))).astype(jnp.bfloat16)
    return dict(w1x=w1x, w1a=w1a, b1=b1p, w2=w2p, b2=b2p, w3p=w3p, b3=b3)


def qvalue_forward(x, a, prep, *, block_b=1024):
    """x: (B, state_dim), a: (B, action_dim) -> (B, 1) f32."""
    B, state_dim = x.shape
    action_dim = a.shape[1]
    hp = prep["w2"].shape[0]

    # Batch tile: always a multiple of 8; split into >=2 grid steps when the
    # batch would otherwise fit in a single tile (lets v7x use both TCs).
    tb_cap = max(8, _round_up(block_b, 8))
    bp_min = _round_up(B, 8)
    if bp_min <= tb_cap:
        tb = _round_up(-(-bp_min // 2), 8) if bp_min > 8 else 8
    else:
        tb = tb_cap
    bp = _round_up(B, tb)

    # Zero-pad batch rows (sliced off at the end) and cast inputs to bf16.
    x = jnp.pad(x, ((0, bp - B), (0, 0))).astype(jnp.bfloat16)
    a = jnp.pad(a, ((0, bp - B), (0, 0))).astype(jnp.bfloat16)

    grid = (bp // tb,)

    def resident(arr):
        # Constant index map -> same block every step, stays VMEM-resident.
        return pl.BlockSpec(arr.shape, lambda i: (0, 0))

    # Explicit VMEM budget: double-buffered I/O blocks + weights + f32
    # intermediates, with headroom, capped at v7x physical VMEM.
    weight_bytes = sum(int(v.size) * v.dtype.itemsize for v in prep.values())
    io_bytes = 2 * tb * (2 * state_dim + 2 * action_dim + 4)
    inter_bytes = 4 * tb * hp * 4
    est = 2 * weight_bytes + io_bytes + inter_bytes
    vmem_limit = int(min(max(2 * est, 32 << 20), 64 << 20))

    out_padded = pl.pallas_call(
        _qvalue_kernel,
        out_shape=jax.ShapeDtypeStruct((bp, 1), jnp.float32),
        grid=grid,
        in_specs=[
            pl.BlockSpec((tb, state_dim), lambda i: (i, 0)),   # x
            pl.BlockSpec((tb, action_dim), lambda i: (i, 0)),  # a
            resident(prep["w1x"]),
            resident(prep["w1a"]),
            resident(prep["b1"]),
            resident(prep["w2"]),
            resident(prep["b2"]),
            resident(prep["w3p"]),
            resident(prep["b3"]),
        ],
        out_specs=pl.BlockSpec((tb, 1), lambda i: (i, 0)),
        compiler_params=pltpu.CompilerParams(
            dimension_semantics=("parallel",),
            vmem_limit_bytes=vmem_limit),
    )(x, a, prep["w1x"], prep["w1a"], prep["b1"],
      prep["w2"], prep["b2"], prep["w3p"], prep["b3"])

    return out_padded[:B, :]


def init_params(key, state_dim, hidden_dim, action_dim):
    """Deterministic init mimicking torch.nn.Linear's default
    (uniform(-1/sqrt(fan_in), 1/sqrt(fan_in))).  Weights stored as (in, out)."""
    def linear(k, fan_in, fan_out):
        kw, kb = jax.random.split(k)
        bound = 1.0 / jnp.sqrt(jnp.float32(fan_in))
        w = jax.random.uniform(kw, (fan_in, fan_out), jnp.float32,
                               minval=-bound, maxval=bound)
        b = jax.random.uniform(kb, (1, fan_out), jnp.float32,
                               minval=-bound, maxval=bound)
        return w, b

    k1, k2, k3 = jax.random.split(key, 3)
    w1, b1 = linear(k1, state_dim + action_dim, hidden_dim)
    w2, b2 = linear(k2, hidden_dim, hidden_dim)
    w3, b3 = linear(k3, hidden_dim, 1)
    return dict(w1=w1, b1=b1, w2=w2, b2=b2, w3=w3, b3=b3)


if __name__ == "__main__":
    state_dim, hidden_dim, action_dim = 16, 32, 4
    batch = 2

    key = jax.random.PRNGKey(0)
    kp, kx, ka = jax.random.split(key, 3)

    params = init_params(kp, state_dim, hidden_dim, action_dim)
    prep = prepare_params(params, state_dim)   # one-time weight prep
    x = jax.random.normal(kx, (batch, state_dim), jnp.float32)
    a = jax.random.normal(ka, (batch, action_dim), jnp.float32)

    q = qvalue_forward(x, a, prep)
    jax.block_until_ready(q)

    # Pure-JAX f32 reference (matches the PyTorch forward). Kernel uses bf16
    # matmuls with f32 accumulation, so compare with a looser tolerance.
    cat = jnp.concatenate([x, a], axis=1)
    h1 = jnp.maximum(cat @ params["w1"] + params["b1"], 0.0)
    h2 = jnp.maximum(h1 @ params["w2"] + params["b2"], 0.0)
    ref = h2 @ params["w3"] + params["b3"]
    assert q.shape == (batch, 1)
    assert jnp.allclose(q, ref, atol=5e-2, rtol=5e-2), (q, ref)

    print("KERNEL_OK")
</pallas_src>

<mosaic_0001>
module attributes {stable_mosaic.version = 11 : i64} {
  func.func @_qvalue_kernel(%arg0: i32, %arg1: memref<8x16xbf16, #tpu.memory_space<vmem>>, %arg2: memref<8x4xbf16, #tpu.memory_space<vmem>>, %arg3: memref<16x128xbf16, #tpu.memory_space<vmem>>, %arg4: memref<4x128xbf16, #tpu.memory_space<vmem>>, %arg5: memref<1x128xf32, #tpu.memory_space<vmem>>, %arg6: memref<128x128xbf16, #tpu.memory_space<vmem>>, %arg7: memref<1x128xf32, #tpu.memory_space<vmem>>, %arg8: memref<128x128xbf16, #tpu.memory_space<vmem>>, %arg9: memref<1x1xf32, #tpu.memory_space<vmem>>, %arg10: memref<8x1xf32, #tpu.memory_space<vmem>>) attributes {dimension_semantics = [#tpu.dimension_semantics<parallel>], iteration_bounds = array<i64: 1>, scalar_prefetch = 0 : i64, scratch_operands = 0 : i64, tpu.core_type = #tpu.core_type<tc>, window_params = [{transform_indices = @transform_0, window_bounds = array<i64: 8, 16>}, {transform_indices = @transform_1, window_bounds = array<i64: 8, 4>}, {pipeline_mode = #tpu.pipeline_mode<synchronous>, transform_indices = @transform_2, window_bounds = array<i64: 16, 128>}, {pipeline_mode = #tpu.pipeline_mode<synchronous>, transform_indices = @transform_3, window_bounds = array<i64: 4, 128>}, {pipeline_mode = #tpu.pipeline_mode<synchronous>, transform_indices = @transform_4, window_bounds = array<i64: 1, 128>}, {pipeline_mode = #tpu.pipeline_mode<synchronous>, transform_indices = @transform_5, window_bounds = array<i64: 128, 128>}, {pipeline_mode = #tpu.pipeline_mode<synchronous>, transform_indices = @transform_6, window_bounds = array<i64: 1, 128>}, {pipeline_mode = #tpu.pipeline_mode<synchronous>, transform_indices = @transform_7, window_bounds = array<i64: 128, 128>}, {pipeline_mode = #tpu.pipeline_mode<synchronous>, transform_indices = @transform_8, window_bounds = array<i64: 1, 1>}, {transform_indices = @transform_9, window_bounds = array<i64: 8, 1>}]} {
    %c0 = arith.constant 0 : index
    %c0_0 = arith.constant 0 : index
    %0 = vector.load %arg1[%c0, %c0_0] : memref<8x16xbf16, #tpu.memory_space<vmem>>, vector<8x16xbf16>
    %c0_1 = arith.constant 0 : index
    %c0_2 = arith.constant 0 : index
    %1 = vector.load %arg3[%c0_1, %c0_2] : memref<16x128xbf16, #tpu.memory_space<vmem>>, vector<16x128xbf16>
    %cst = arith.constant dense<0.000000e+00> : vector<8x128xf32>
    %2 = tpu.matmul %0, %1, %cst {dimension_numbers = #tpu.dot_dimension_numbers<[1], [0], [0], [1], [0, 0, 1, 1], [], []>} : vector<8x16xbf16>, vector<16x128xbf16>, vector<8x128xf32> -> vector<8x128xf32>
    %c0_3 = arith.constant 0 : index
    %c0_4 = arith.constant 0 : index
    %3 = vector.load %arg2[%c0_3, %c0_4] : memref<8x4xbf16, #tpu.memory_space<vmem>>, vector<8x4xbf16>
    %c0_5 = arith.constant 0 : index
    %c0_6 = arith.constant 0 : index
    %4 = vector.load %arg4[%c0_5, %c0_6] : memref<4x128xbf16, #tpu.memory_space<vmem>>, vector<4x128xbf16>
    %cst_7 = arith.constant dense<0.000000e+00> : vector<8x128xf32>
    %5 = tpu.matmul %3, %4, %cst_7 {dimension_numbers = #tpu.dot_dimension_numbers<[1], [0], [0], [1], [0, 0, 1, 1], [], []>} : vector<8x4xbf16>, vector<4x128xbf16>, vector<8x128xf32> -> vector<8x128xf32>
    %6 = arith.addf %2, %5 : vector<8x128xf32>
    %c0_8 = arith.constant 0 : index
    %c0_9 = arith.constant 0 : index
    %7 = vector.load %arg5[%c0_8, %c0_9] : memref<1x128xf32, #tpu.memory_space<vmem>>, vector<1x128xf32>
    %8 = vector.broadcast %7 : vector<1x128xf32> to vector<8x128xf32>
    %9 = arith.addf %6, %8 : vector<8x128xf32>
    %cst_10 = arith.constant 0.000000e+00 : f32
    %10 = vector.broadcast %cst_10 : f32 to vector<8x128xf32>
    %11 = arith.maximumf %9, %10 : vector<8x128xf32>
    %12 = arith.truncf %11 : vector<8x128xf32> to vector<8x128xbf16>
    %c0_11 = arith.constant 0 : index
    %c0_12 = arith.constant 0 : index
    %13 = vector.load %arg6[%c0_11, %c0_12] : memref<128x128xbf16, #tpu.memory_space<vmem>>, vector<128x128xbf16>
    %cst_13 = arith.constant dense<0.000000e+00> : vector<8x128xf32>
    %14 = tpu.matmul %12, %13, %cst_13 {dimension_numbers = #tpu.dot_dimension_numbers<[1], [0], [0], [1], [0, 0, 1, 1], [], []>} : vector<8x128xbf16>, vector<128x128xbf16>, vector<8x128xf32> -> vector<8x128xf32>
    %c0_14 = arith.constant 0 : index
    %c0_15 = arith.constant 0 : index
    %15 = vector.load %arg7[%c0_14, %c0_15] : memref<1x128xf32, #tpu.memory_space<vmem>>, vector<1x128xf32>
    %16 = vector.broadcast %15 : vector<1x128xf32> to vector<8x128xf32>
    %17 = arith.addf %14, %16 : vector<8x128xf32>
    %cst_16 = arith.constant 0.000000e+00 : f32
    %18 = vector.broadcast %cst_16 : f32 to vector<8x128xf32>
    %19 = arith.maximumf %17, %18 : vector<8x128xf32>
    %20 = arith.truncf %19 : vector<8x128xf32> to vector<8x128xbf16>
    %c0_17 = arith.constant 0 : index
    %c0_18 = arith.constant 0 : index
    %21 = vector.load %arg8[%c0_17, %c0_18] : memref<128x128xbf16, #tpu.memory_space<vmem>>, vector<128x128xbf16>
    %cst_19 = arith.constant dense<0.000000e+00> : vector<8x128xf32>
    %22 = tpu.matmul %20, %21, %cst_19 {dimension_numbers = #tpu.dot_dimension_numbers<[1], [0], [0], [1], [0, 0, 1, 1], [], []>} : vector<8x128xbf16>, vector<128x128xbf16>, vector<8x128xf32> -> vector<8x128xf32>
    %23 = vector.extract_strided_slice %22 {offsets = [0, 0], sizes = [8, 1], strides = [1, 1]} : vector<8x128xf32> to vector<8x1xf32>
    %c0_20 = arith.constant 0 : index
    %c0_21 = arith.constant 0 : index
    %24 = vector.load %arg9[%c0_20, %c0_21] : memref<1x1xf32, #tpu.memory_space<vmem>>, vector<1x1xf32>
    %25 = vector.broadcast %24 : vector<1x1xf32> to vector<8x1xf32>
    %26 = arith.addf %23, %25 : vector<8x1xf32>
    %c0_22 = arith.constant 0 : index
    %c0_23 = arith.constant 0 : index
    %27 = vector.load %arg10[%c0_22, %c0_23] : memref<8x1xf32, #tpu.memory_space<vmem>>, vector<8x1xf32>
    tpu.vector_store %arg10[%c0_22, %c0_23], %26 {strides = array<i32>} : memref<8x1xf32, #tpu.memory_space<vmem>>, vector<8x1xf32>,
    return
  }
  func.func @transform_0(%arg0: i32) -> (i32, i32) {
    %c0_i32 = arith.constant 0 : i32
    %c0_i32_0 = arith.constant 0 : i32
    return %arg0, %c0_i32 : i32, i32
  }
  func.func @transform_1(%arg0: i32) -> (i32, i32) {
    %c0_i32 = arith.constant 0 : i32
    %c0_i32_0 = arith.constant 0 : i32
    return %arg0, %c0_i32 : i32, i32
  }
  func.func @transform_2(%arg0: i32) -> (i32, i32) {
    %c0_i32 = arith.constant 0 : i32
    %c0_i32_0 = arith.constant 0 : i32
    %c0_i32_1 = arith.constant 0 : i32
    return %c0_i32, %c0_i32_0 : i32, i32
  }
  func.func @transform_3(%arg0: i32) -> (i32, i32) {
    %c0_i32 = arith.constant 0 : i32
    %c0_i32_0 = arith.constant 0 : i32
    %c0_i32_1 = arith.constant 0 : i32
    return %c0_i32, %c0_i32_0 : i32, i32
  }
  func.func @transform_4(%arg0: i32) -> (i32, i32) {
    %c0_i32 = arith.constant 0 : i32
    %c0_i32_0 = arith.constant 0 : i32
    %c0_i32_1 = arith.constant 0 : i32
    return %c0_i32, %c0_i32_0 : i32, i32
  }
  func.func @transform_5(%arg0: i32) -> (i32, i32) {
    %c0_i32 = arith.constant 0 : i32
    %c0_i32_0 = arith.constant 0 : i32
    %c0_i32_1 = arith.constant 0 : i32
    return %c0_i32, %c0_i32_0 : i32, i32
  }
  func.func @transform_6(%arg0: i32) -> (i32, i32) {
    %c0_i32 = arith.constant 0 : i32
    %c0_i32_0 = arith.constant 0 : i32
    %c0_i32_1 = arith.constant 0 : i32
    return %c0_i32, %c0_i32_0 : i32, i32
  }
  func.func @transform_7(%arg0: i32) -> (i32, i32) {
    %c0_i32 = arith.constant 0 : i32
    %c0_i32_0 = arith.constant 0 : i32
    %c0_i32_1 = arith.constant 0 : i32
    return %c0_i32, %c0_i32_0 : i32, i32
  }
  func.func @transform_8(%arg0: i32) -> (i32, i32) {
    %c0_i32 = arith.constant 0 : i32
    %c0_i32_0 = arith.constant 0 : i32
    %c0_i32_1 = arith.constant 0 : i32
    return %c0_i32, %c0_i32_0 : i32, i32
  }
  func.func @transform_9(%arg0: i32) -> (i32, i32) {
    %c0_i32 = arith.constant 0 : i32
    %c0_i32_0 = arith.constant 0 : i32
    return %arg0, %c0_i32 : i32, i32
  }
}

</mosaic_0001>

<llo_original>
// kernel: tpu_custom_call.1
$region0: #{tpu_custom_call.1}
  #allocation0 [shape = 'u32[]', space=smem, size = 0x4, offset = 0x4, fixed_abs, tag = 'smem constant byte address 0x4 - core index']
  #allocation1 [shape = 'u32[144,128]{1,0:T(1,128)}', space=vmem, size = 0x12000, scoped, tag = 'internal scratch']
  #allocation2 [shape = 'f32[1,1]{1,0:T(1,128)S(1)}', space=vmem, size = 0x200, scoped, tag = 'scoped memory for tpu_custom_call.1']
  %s0 = inlined_call_operand.vmem [shape: bf16[8,16], index: 0, kind: input, shape index: {}]
  %s1 = inlined_call_operand.vmem [shape: bf16[8,4], index: 1, kind: input, shape index: {}]
  %s2 = inlined_call_operand.vmem [shape: bf16[16,128], index: 2, kind: input, shape index: {}]
  %s3 = inlined_call_operand.vmem [shape: bf16[4,128], index: 3, kind: input, shape index: {}]
  %s4 = inlined_call_operand.vmem [shape: f32[1,128], index: 4, kind: input, shape index: {}]
  %s5 = inlined_call_operand.hbm [shape: bf16[128,128], index: 5, kind: input, shape index: {}]
  %s6 = inlined_call_operand.vmem [shape: f32[1,128], index: 6, kind: input, shape index: {}]
  %s7 = inlined_call_operand.hbm [shape: bf16[128,128], index: 7, kind: input, shape index: {}]
  %s8 = inlined_call_operand.<no memory space> [shape: f32[1,1], index: 8, kind: input, shape index: {}]
  %s9 = inlined_call_operand.vmem [shape: f32[8,1], index: 9, kind: output, shape index: {}]
  %s10 = sld [smem:[#allocation0]]
  $region54: #{tpu_custom_call.1} parent=0
    _
  %s12 = ssub.s32 1, %s10
  %s13 = scalar_select 0, %s12, %s10
  %v14 = vstv %s8
  %15 = vst [vmem:[#allocation2] sm:$0x1] %v14
  $region1: #{tpu_custom_call.1} parent=0
    #allocation3 [shape = 'u8[32768]{0}', space=vmem, size = 0x8000, scoped, tag = 'input window, operand 5, single buffered']
    #allocation4 [shape = 's32[1]{0}', space=sflag, size = 0x4, scoped, tag = 'scoped memory for tpu_custom_call.1']
    #allocation5 [shape = 'u8[32768]{0}', space=vmem, size = 0x8000, scoped, tag = 'input window, operand 7, single buffered']
    #allocation6 [shape = 's32[1]{0}', space=sflag, size = 0x4, scoped, tag = 'scoped memory for tpu_custom_call.1']
    %16 = vsyncpa [#allocation4], 0
    %17 = vsyncpa [#allocation6], 0
    // Predicated region
    $region2: #{tpu_custom_call.1} parent=1 // pred_check
      _
    $region3: #{tpu_custom_call.1} parent=1 // pred_check_branch
      %19 = sbr.rel (0) target = $region5
    $region4: #{tpu_custom_call.1} parent=1 // pred_region
      _
    $region5: #{tpu_custom_call.1} parent=1 // pred_fallthru
      _
    // Predicated region
    $region6: #{tpu_custom_call.1} parent=1 // pred_check
      _
    $region7: #{tpu_custom_call.1} parent=1 // pred_check_branch
      %21 = sbr.rel (0) target = $region9
    $region8: #{tpu_custom_call.1} parent=1 // pred_region
      _
    $region9: #{tpu_custom_call.1} parent=1 // pred_fallthru
      _
    // Predicated region
    $region10: #{tpu_custom_call.1} parent=1 // pred_check
      _
    $region11: #{tpu_custom_call.1} parent=1 // pred_check_branch
      %23 = sbr.rel (0) target = $region13
    $region12: #{tpu_custom_call.1} parent=1 // pred_region
      _
    $region13: #{tpu_custom_call.1} parent=1 // pred_fallthru
      _
    // Predicated region
    $region14: #{tpu_custom_call.1} parent=1 // pred_check
      _
    $region15: #{tpu_custom_call.1} parent=1 // pred_check_branch
      %25 = sbr.rel (0) target = $region17
    $region16: #{tpu_custom_call.1} parent=1 // pred_region
      _
    $region17: #{tpu_custom_call.1} parent=1 // pred_fallthru
      _
    // Predicated region
    $region18: #{tpu_custom_call.1} parent=1 // pred_check
      _
    $region19: #{tpu_custom_call.1} parent=1 // pred_check_branch
      %27 = sbr.rel (0) target = $region21
    $region20: #{tpu_custom_call.1} parent=1 // pred_region
      _
    $region21: #{tpu_custom_call.1} parent=1 // pred_fallthru
      _
    // Predicated region
    $region22: #{tpu_custom_call.1} parent=1 // pred_check
      _
    $region23: #{tpu_custom_call.1} parent=1 // pred_check_branch
      %29 = sbr.rel (0) target = $region25
    $region24: #{tpu_custom_call.1} parent=1 // pred_region
      %s31 = ssub.s32 1024, 1024
      %32 = vsyncadd [#allocation4], %s31
      %s33 = sshll.u32 [#allocation3], 4
      %s34 = int_to_ptr.vmem [resolvable:$true] %s33
      %39 = dma.hbm_to_vmem [thread:$0]  %s5, 1024, %s34, [#allocation4], 64, 64, 4
    $region25: #{tpu_custom_call.1} parent=1 // pred_fallthru
      _
    // Predicated region
    $region26: #{tpu_custom_call.1} parent=1 // pred_check
      _
    $region27: #{tpu_custom_call.1} parent=1 // pred_check_branch
      %41 = sbr.rel (0) target = $region29
    $region28: #{tpu_custom_call.1} parent=1 // pred_region
      _
    $region29: #{tpu_custom_call.1} parent=1 // pred_fallthru
      _
    // Predicated region
    $region30: #{tpu_custom_call.1} parent=1 // pred_check
      _
    $region31: #{tpu_custom_call.1} parent=1 // pred_check_branch
      %43 = sbr.rel (0) target = $region33
    $region32: #{tpu_custom_call.1} parent=1 // pred_region
      %s45 = ssub.s32 1024, 1024
      %46 = vsyncadd [#allocation6], %s45
      %s47 = sshll.u32 [#allocation5], 4
      %s48 = int_to_ptr.vmem [resolvable:$true] %s47
      %53 = dma.hbm_to_vmem [thread:$0]  %s7, 1024, %s48, [#allocation6], 64, 64, 4
    $region33: #{tpu_custom_call.1} parent=1 // pred_fallthru
      _
    // Predicated region
    $region34: #{tpu_custom_call.1} parent=1 // pred_check
      _
    $region35: #{tpu_custom_call.1} parent=1 // pred_check_branch
      %55 = sbr.rel (0) target = $region37
    $region36: #{tpu_custom_call.1} parent=1 // pred_region
      _
    $region37: #{tpu_custom_call.1} parent=1 // pred_fallthru
      _
    // Predicated region
    $region38: #{tpu_custom_call.1} parent=1 // pred_check
      _
    $region39: #{tpu_custom_call.1} parent=1 // pred_check_branch
      %57 = sbr.rel (0) target = $region41
    $region40: #{tpu_custom_call.1} parent=1 // pred_region
      %58 = dma.done [#allocation4], 1024
    $region41: #{tpu_custom_call.1} parent=1 // pred_fallthru
      _
    // Predicated region
    $region42: #{tpu_custom_call.1} parent=1 // pred_check
      _
    $region43: #{tpu_custom_call.1} parent=1 // pred_check_branch
      %60 = sbr.rel (0) target = $region45
    $region44: #{tpu_custom_call.1} parent=1 // pred_region
      %61 = dma.done [#allocation6], 1024
    $region45: #{tpu_custom_call.1} parent=1 // pred_fallthru
      _
    %v63 = vld [vmem:[%s0] sm:$0xf]
    %v64 = vld [vmem:[%s2] sm:$0xf]
    %v65 = vld [vmem:[%s2 + $0x4] sm:$0xf]
    %v66 = vld [vmem:[%s1] sm:$0xf]
    %v67 = vld [vmem:[%s3] sm:$0x3]
    %vm68 = vcmask 31744
    %v70 = vsel %vm68, %v66, 0
    %vm72 = vcmask 1041408
    %v74 = vsel %vm72, %v67, 0
    %76 = vmatprep.subr.bf16.mxu0 0
    %77 = vmatpush1.bf16.msra.mxu0 %v74
    %78 = vmatprep.subr.bf16.mxu0 0
    %79 = vmatpush1.bf16.msra.mxu0 0
    %80 = vmatprep.subr.bf16.mxu0 0
    %81 = vmatpush1.bf16.msra.mxu0 0
    %82 = vmatprep.subr.bf16.mxu0 0
    %83 = vmatpush1.bf16.msra.mxu0 0
    %84 = vmatprep.subr.bf16.mxu0 0
    %85 = vmatpush1.bf16.msra.mxu0 0
    %86 = vmatprep.subr.bf16.mxu0 0
    %87 = vmatpush1.bf16.msra.mxu0 0
    %88 = vmatprep.subr.bf16.mxu0 0
    %89 = vmatpush1.bf16.msra.mxu0 0
    %90 = vmatprep.subr.bf16.mxu0 0
    %91 = vmatpush1.bf16.msra.mxu0 0
    %92 = vmatprep.subr.bf16.mxu0 0
    %93 = vmatpush1.bf16.msra.mxu0 0
    %94 = vmatprep.subr.bf16.mxu0 0
    %95 = vmatpush1.bf16.msra.mxu0 0
    %96 = vmatprep.subr.bf16.mxu0 0
    %97 = vmatpush1.bf16.msra.mxu0 0
    %98 = vmatprep.subr.bf16.mxu0 0
    %99 = vmatpush1.bf16.msra.mxu0 0
    %100 = vmatprep.subr.bf16.mxu0 0
    %101 = vmatpush1.bf16.msra.mxu0 0
    %102 = vmatprep.subr.bf16.mxu0 0
    %103 = vmatpush1.bf16.msra.mxu0 0
    %104 = vmatprep.subr.bf16.mxu0 0
    %105 = vmatpush1.bf16.msra.mxu0 0
    %106 = vmatprep.subr.bf16.mxu0 0
    %107 = vmatpush1.bf16.msra.mxu0 0
    %108 = vmatprep.mubr.bf16.mxu0 0
    %109 = vmatmul.mubr.bf16.gmra.mrb[0].mxu0 %v70
    %v110 = vpop.f32.mrb[0].mxu0
    %v111 = vadd.f32 0.0, %v110
    %v112 = vpop.f32.mrb[0].mxu0
    %v113 = vpop.f32.mrb[0].mxu0
    %v114 = vpop.f32.mrb[0].mxu0
    %115 = vdwg.mxu0
    %v118 = vunpack.c.l.b16 %v64
    %v119 = vunpack.c.l.b16 %v65
    %v120 = vpack.c.b16 %v119, %v118
    %vm122 = vcmask 130048
    %v124 = vsel %vm122, %v63, 0
    %126 = vmatprep.subr.bf16.mxu0 0
    %127 = vmatpush1.bf16.msra.mxu0 %v120
    %128 = vmatprep.subr.bf16.mxu0 0
    %129 = vmatpush1.bf16.msra.mxu0 0
    %130 = vmatprep.subr.bf16.mxu0 0
    %131 = vmatpush1.bf16.msra.mxu0 0
    %132 = vmatprep.subr.bf16.mxu0 0
    %133 = vmatpush1.bf16.msra.mxu0 0
    %134 = vmatprep.subr.bf16.mxu0 0
    %135 = vmatpush1.bf16.msra.mxu0 0
    %136 = vmatprep.subr.bf16.mxu0 0
    %137 = vmatpush1.bf16.msra.mxu0 0
    %138 = vmatprep.subr.bf16.mxu0 0
    %139 = vmatpush1.bf16.msra.mxu0 0
    %140 = vmatprep.subr.bf16.mxu0 0
    %141 = vmatpush1.bf16.msra.mxu0 0
    %142 = vmatprep.subr.bf16.mxu0 0
    %143 = vmatpush1.bf16.msra.mxu0 0
    %144 = vmatprep.subr.bf16.mxu0 0
    %145 = vmatpush1.bf16.msra.mxu0 0
    %146 = vmatprep.subr.bf16.mxu0 0
    %147 = vmatpush1.bf16.msra.mxu0 0
    %148 = vmatprep.subr.bf16.mxu0 0
    %149 = vmatpush1.bf16.msra.mxu0 0
    %150 = vmatprep.subr.bf16.mxu0 0
    %151 = vmatpush1.bf16.msra.mxu0 0
    %152 = vmatprep.subr.bf16.mxu0 0
    %153 = vmatpush1.bf16.msra.mxu0 0
    %154 = vmatprep.subr.bf16.mxu0 0
    %155 = vmatpush1.bf16.msra.mxu0 0
    %156 = vmatprep.subr.bf16.mxu0 0
    %157 = vmatpush1.bf16.msra.mxu0 0
    %158 = vmatprep.mubr.bf16.mxu0 0
    %159 = vmatmul.mubr.bf16.gmra.mrb[0].mxu0 %v124
    %v160 = vpop.f32.mrb[0].mxu0
    %v161 = vadd.f32 %v111, %v160
    %v162 = vpop.f32.mrb[0].mxu0
    %v163 = vpop.f32.mrb[0].mxu0
    %v164 = vpop.f32.mrb[0].mxu0
    %165 = vdwg.mxu0
    %v166 = vld [vmem:[%s4] sm:$0x1]
    %v168 = vlaneseq
    %v169 = vshrl.u32 %v168, 7
    %v170 = vsub.s32 0, %v169
    %v171 = vrot.slane %v166, %v170
    %v173 = vadd.f32 %v161, %v171
    %v174 = vmax.f32 %v173, 0.0
    %v175 = vpack.c.bf16 %v174, %v174
    %v176 = vld [vmem:[#allocation3] sm:$0xf]
    %v177 = vld [vmem:[#allocation3 + $0x4] sm:$0xf]
    %v178 = vld [vmem:[#allocation3 + $0x8] sm:$0xf]
    %v179 = vld [vmem:[#allocation3 + $0xc] sm:$0xf]
    %v180 = vld [vmem:[#allocation3 + $0x10] sm:$0xf]
    %v181 = vld [vmem:[#allocation3 + $0x14] sm:$0xf]
    %v182 = vld [vmem:[#allocation3 + $0x18] sm:$0xf]
    %v183 = vld [vmem:[#allocation3 + $0x1c] sm:$0xf]
    %v184 = vld [vmem:[#allocation3 + $0x20] sm:$0xf]
    %v185 = vld [vmem:[#allocation3 + $0x24] sm:$0xf]
    %v186 = vld [vmem:[#allocation3 + $0x28] sm:$0xf]
    %v187 = vld [vmem:[#allocation3 + $0x2c] sm:$0xf]
    %v188 = vld [vmem:[#allocation3 + $0x30] sm:$0xf]
    %v189 = vld [vmem:[#allocation3 + $0x34] sm:$0xf]
    %v190 = vld [vmem:[#allocation3 + $0x38] sm:$0xf]
    %v191 = vld [vmem:[#allocation3 + $0x3c] sm:$0xf]
    %v192 = vld [vmem:[%s6] sm:$0x1]
    %v194 = vlaneseq
    %v195 = vshrl.u32 %v194, 7
    %v196 = vsub.s32 0, %v195
    %v197 = vrot.slane %v192, %v196
    %v215 = vunpack.c.l.b16 %v176
    %v216 = vunpack.c.l.b16 %v177
    %v217 = vunpack.c.l.b16 %v178
    %v218 = vunpack.c.l.b16 %v179
    %v219 = vunpack.c.l.b16 %v180
    %v220 = vunpack.c.l.b16 %v181
    %v221 = vunpack.c.l.b16 %v182
    %v222 = vunpack.c.l.b16 %v183
    %v223 = vunpack.c.l.b16 %v184
    %v224 = vunpack.c.l.b16 %v185
    %v225 = vunpack.c.l.b16 %v186
    %v226 = vunpack.c.l.b16 %v187
    %v227 = vunpack.c.l.b16 %v188
    %v228 = vunpack.c.l.b16 %v189
    %v229 = vunpack.c.l.b16 %v190
    %v230 = vunpack.c.l.b16 %v191
    %v231 = vpack.c.b16 %v216, %v215
    %v232 = vpack.c.b16 %v218, %v217
    %v233 = vpack.c.b16 %v220, %v219
    %v234 = vpack.c.b16 %v222, %v221
    %v235 = vpack.c.b16 %v224, %v223
    %v236 = vpack.c.b16 %v226, %v225
    %v237 = vpack.c.b16 %v228, %v227
    %v238 = vpack.c.b16 %v230, %v229
    %247 = vmatprep.subr.bf16.mxu0 0
    %248 = vmatpush1.bf16.msra.mxu0 %v231
    %249 = vmatprep.subr.bf16.mxu0 0
    %250 = vmatpush1.bf16.msra.mxu0 %v232
    %251 = vmatprep.subr.bf16.mxu0 0
    %252 = vmatpush1.bf16.msra.mxu0 %v233
    %253 = vmatprep.subr.bf16.mxu0 0
    %254 = vmatpush1.bf16.msra.mxu0 %v234
    %255 = vmatprep.subr.bf16.mxu0 0
    %256 = vmatpush1.bf16.msra.mxu0 %v235
    %257 = vmatprep.subr.bf16.mxu0 0
    %258 = vmatpush1.bf16.msra.mxu0 %v236
    %259 = vmatprep.subr.bf16.mxu0 0
    %260 = vmatpush1.bf16.msra.mxu0 %v237
    %261 = vmatprep.subr.bf16.mxu0 0
    %262 = vmatpush1.bf16.msra.mxu0 %v238
    %263 = vmatprep.subr.bf16.mxu0 0
    %264 = vmatpush1.bf16.msra.mxu0 0
    %265 = vmatprep.subr.bf16.mxu0 0
    %266 = vmatpush1.bf16.msra.mxu0 0
    %267 = vmatprep.subr.bf16.mxu0 0
    %268 = vmatpush1.bf16.msra.mxu0 0
    %269 = vmatprep.subr.bf16.mxu0 0
    %270 = vmatpush1.bf16.msra.mxu0 0
    %271 = vmatprep.subr.bf16.mxu0 0
    %272 = vmatpush1.bf16.msra.mxu0 0
    %273 = vmatprep.subr.bf16.mxu0 0
    %274 = vmatpush1.bf16.msra.mxu0 0
    %275 = vmatprep.subr.bf16.mxu0 0
    %276 = vmatpush1.bf16.msra.mxu0 0
    %277 = vmatprep.subr.bf16.mxu0 0
    %278 = vmatpush1.bf16.msra.mxu0 0
    %279 = vmatprep.mubr.bf16.mxu0 0
    %280 = vmatmul.mubr.bf16.gmra.mrb[0].mxu0 %v175
    %v281 = vpop.f32.mrb[0].mxu0
    %v282 = vadd.f32 %v197, %v281
    %v283 = vpop.f32.mrb[0].mxu0
    %v284 = vpop.f32.mrb[0].mxu0
    %v285 = vpop.f32.mrb[0].mxu0
    %286 = vdwg.mxu0
    %v287 = vmax.f32 %v282, 0.0
    %v288 = vpack.c.bf16 %v287, %v287
    %v289 = vld [vmem:[#allocation5] sm:$0xf]
    %v290 = vld [vmem:[#allocation5 + $0x4] sm:$0xf]
    %v291 = vld [vmem:[#allocation5 + $0x8] sm:$0xf]
    %v292 = vld [vmem:[#allocation5 + $0xc] sm:$0xf]
    %v293 = vld [vmem:[#allocation5 + $0x10] sm:$0xf]
    %v294 = vld [vmem:[#allocation5 + $0x14] sm:$0xf]
    %v295 = vld [vmem:[#allocation5 + $0x18] sm:$0xf]
    %v296 = vld [vmem:[#allocation5 + $0x1c] sm:$0xf]
    %v297 = vld [vmem:[#allocation5 + $0x20] sm:$0xf]
    %v298 = vld [vmem:[#allocation5 + $0x24] sm:$0xf]
    %v299 = vld [vmem:[#allocation5 + $0x28] sm:$0xf]
    %v300 = vld [vmem:[#allocation5 + $0x2c] sm:$0xf]
    %v301 = vld [vmem:[#allocation5 + $0x30] sm:$0xf]
    %v302 = vld [vmem:[#allocation5 + $0x34] sm:$0xf]
    %v303 = vld [vmem:[#allocation5 + $0x38] sm:$0xf]
    %v304 = vld [vmem:[#allocation5 + $0x3c] sm:$0xf]
    %v321 = vunpack.c.l.b16 %v289
    %v322 = vunpack.c.l.b16 %v290
    %v323 = vunpack.c.l.b16 %v291
    %v324 = vunpack.c.l.b16 %v292
    %v325 = vunpack.c.l.b16 %v293
    %v326 = vunpack.c.l.b16 %v294
    %v327 = vunpack.c.l.b16 %v295
    %v328 = vunpack.c.l.b16 %v296
    %v329 = vunpack.c.l.b16 %v297
    %v330 = vunpack.c.l.b16 %v298
    %v331 = vunpack.c.l.b16 %v299
    %v332 = vunpack.c.l.b16 %v300
    %v333 = vunpack.c.l.b16 %v301
    %v334 = vunpack.c.l.b16 %v302
    %v335 = vunpack.c.l.b16 %v303
    %v336 = vunpack.c.l.b16 %v304
    %v337 = vpack.c.b16 %v322, %v321
    %v338 = vpack.c.b16 %v324, %v323
    %v339 = vpack.c.b16 %v326, %v325
    %v340 = vpack.c.b16 %v328, %v327
    %v341 = vpack.c.b16 %v330, %v329
    %v342 = vpack.c.b16 %v332, %v331
    %v343 = vpack.c.b16 %v334, %v333
    %v344 = vpack.c.b16 %v336, %v335
    %353 = vmatprep.subr.bf16.mxu0 0
    %354 = vmatpush1.bf16.msra.mxu0 %v337
    %355 = vmatprep.subr.bf16.mxu0 0
    %356 = vmatpush1.bf16.msra.mxu0 %v338
    %357 = vmatprep.subr.bf16.mxu0 0
    %358 = vmatpush1.bf16.msra.mxu0 %v339
    %359 = vmatprep.subr.bf16.mxu0 0
    %360 = vmatpush1.bf16.msra.mxu0 %v340
    %361 = vmatprep.subr.bf16.mxu0 0
    %362 = vmatpush1.bf16.msra.mxu0 %v341
    %363 = vmatprep.subr.bf16.mxu0 0
    %364 = vmatpush1.bf16.msra.mxu0 %v342
    %365 = vmatprep.subr.bf16.mxu0 0
    %366 = vmatpush1.bf16.msra.mxu0 %v343
    %367 = vmatprep.subr.bf16.mxu0 0
    %368 = vmatpush1.bf16.msra.mxu0 %v344
    %369 = vmatprep.subr.bf16.mxu0 0
    %370 = vmatpush1.bf16.msra.mxu0 0
    %371 = vmatprep.subr.bf16.mxu0 0
    %372 = vmatpush1.bf16.msra.mxu0 0
    %373 = vmatprep.subr.bf16.mxu0 0
    %374 = vmatpush1.bf16.msra.mxu0 0
    %375 = vmatprep.subr.bf16.mxu0 0
    %376 = vmatpush1.bf16.msra.mxu0 0
    %377 = vmatprep.subr.bf16.mxu0 0
    %378 = vmatpush1.bf16.msra.mxu0 0
    %379 = vmatprep.subr.bf16.mxu0 0
    %380 = vmatpush1.bf16.msra.mxu0 0
    %381 = vmatprep.subr.bf16.mxu0 0
    %382 = vmatpush1.bf16.msra.mxu0 0
    %383 = vmatprep.subr.bf16.mxu0 0
    %384 = vmatpush1.bf16.msra.mxu0 0
    %385 = vmatprep.mubr.bf16.mxu0 0
    %386 = vmatmul.mubr.bf16.gmra.mrb[0].mxu0 %v288
    %v387 = vpop.f32.mrb[0].mxu0
    %v388 = vadd.f32 0.0, %v387
    %v389 = vpop.f32.mrb[0].mxu0
    %v390 = vpop.f32.mrb[0].mxu0
    %v391 = vpop.f32.mrb[0].mxu0
    %392 = vdwg.mxu0
    %v393 = vld [vmem:[#allocation2] sm:$0x1]
    %v395 = vlaneseq
    %v396 = vshrl.u32 %v395, 7
    %v397 = vsub.s32 0, %v396
    %v398 = vrot.slane %v393, %v397
    %v400 = vadd.f32 %v388, %v398
    %vm401 = vcmask 7168
    %402 = vst.msk [vmem:[%s9] sm:$0xff] %vm401, %v400
    // Predicated region
    $region46: #{tpu_custom_call.1} parent=1 // pred_check
      _
    $region47: #{tpu_custom_call.1} parent=1 // pred_check_branch
      %404 = sbr.rel (0) target = $region49
    $region48: #{tpu_custom_call.1} parent=1 // pred_region
      _
    $region49: #{tpu_custom_call.1} parent=1 // pred_fallthru
      _
    // Predicated region
    $region50: #{tpu_custom_call.1} parent=1 // pred_check
      _
    $region51: #{tpu_custom_call.1} parent=1 // pred_check_branch
      %406 = sbr.rel (0) target = $region53
    $region52: #{tpu_custom_call.1} parent=1 // pred_region
      _
    $region53: #{tpu_custom_call.1} parent=1 // pred_fallthru
      _
    %407 = vsyncpa [#allocation4], 1
    %408 = vsyncpa [#allocation6], 1

</llo_original>
